<compile_context>
chip_gen: v6e
topology: v6e:2x2x1
jax: 0.10.0
libtpu: 0.0.40
codegen_flags: <defaults>
</compile_context>

<pallas_src>
import jax
import jax.numpy as jnp
from jax.experimental import pallas as pl
from jax.experimental.pallas import tpu as pltpu


_IN = 512           # fc1 in_features (fixed by the module)
_H = 128            # fc1 out_features / fc2 in_features
_MAX_TILE_B = 8192  # upper bound on batch rows per grid step
_X_BUFS = 3         # pipeline depth requested for the streamed x input


def _mlp_kernel(x_ref, w1_ref, b1_ref, w2_ref, b2_ref, out_ref):
    # Cast x in-kernel (x streams from HBM in its original dtype).
    x = x_ref[...].astype(w1_ref.dtype)
    h = jnp.dot(x, w1_ref[...], preferred_element_type=jnp.float32)
    h = jnp.maximum(h + b1_ref[...], 0.0)          # f32 bias-add + ReLU
    o = jnp.dot(h.astype(w2_ref.dtype), w2_ref[...],
                preferred_element_type=jnp.float32)
    out_ref[...] = (o + b2_ref[...]).astype(out_ref.dtype)


def _mlp_kernel_with_inter(x_ref, w1_ref, b1_ref, w2_ref, b2_ref,
                           out_ref, inter_ref):
    # Debug path: also write the intermediate activation to HBM.
    x = x_ref[...].astype(w1_ref.dtype)
    h = jnp.dot(x, w1_ref[...], preferred_element_type=jnp.float32)
    h = jnp.maximum(h + b1_ref[...], 0.0)
    inter_ref[...] = h.astype(inter_ref.dtype)
    o = jnp.dot(h.astype(w2_ref.dtype), w2_ref[...],
                preferred_element_type=jnp.float32)
    out_ref[...] = (o + b2_ref[...]).astype(out_ref.dtype)


def _tpu_budget_and_cores():
    """(scoped VMEM budget in bytes, # TensorCores per chip) for this machine."""
    try:
        kind = jax.devices()[0].device_kind.lower()
    except Exception:
        kind = ""
    if "v7" in kind:
        return 48 * 1024 * 1024, 2    # 64 MiB physical VMEM, 2 TCs/chip
    return 64 * 1024 * 1024, 1        # v5e / v6e: 128 MiB physical, 1 TC


def _choose_tile_b(B, D, x_isize, c_isize, o_isize, budget, n_cores):
    # Resident operands (weights + biases); count 2x for pipeline buffers.
    resident = 2 * (_IN * _H * c_isize + _H * D * c_isize + (_H + D) * 4)
    # Streaming + temporary VMEM cost per batch row.
    per_row = (_X_BUFS * _IN * x_isize    # multi-buffered x tiles
               + 2 * D * o_isize          # double-buffered out tiles
               + _IN * c_isize            # in-kernel cast copy of the x tile
               + _H * 4 + _H * c_isize)   # f32 h temp + cast copy for fc2
    avail = budget - resident - (4 << 20)  # 4 MiB headroom
    tile_b = max(256, min(_MAX_TILE_B, (avail // per_row) // 256 * 256))
    if B <= tile_b:
        # Whole batch fits in one tile: still split so every TensorCore gets
        # work (v7x megacore); otherwise a single tile covers the batch.
        per_core = -(-B // n_cores)          # cdiv
        per_core = -(-per_core // 8) * 8     # round up to a sublane multiple
        tile_b = per_core if 0 < per_core < B else B
    return tile_b


def _row_spec(tile_b, feat, buffered):
    """BlockSpec for a (tile_b, feat) row-streamed operand."""
    index_map = lambda i: (i, 0)
    if buffered:
        try:
            return pl.BlockSpec((tile_b, feat), index_map,
                                pipeline_mode=pl.Buffered(_X_BUFS))
        except (TypeError, AttributeError):
            pass  # older Pallas: fall back to the default double buffer
    return pl.BlockSpec((tile_b, feat), index_map)


def cldnn_c_jan_forward(x, w1, b1, w2, b2, return_intermediate=False,
                        compute_dtype=jnp.bfloat16, tile_b=None):
    """x: (B, 512); w1: (512, 128); b1: (128,); w2: (128, D); b2: (D,).

    compute_dtype: dtype fed to the MXU (default bf16; accumulation, bias-add
    and ReLU stay f32). Outputs are returned in x.dtype.
    """
    B, in_features = x.shape
    assert in_features == _IN and w1.shape == (_IN, _H)
    D = w2.shape[1]
    out_dtype = x.dtype

    # Weights are tiny; cast once here (no-op if the caller pre-cast them).
    w1c = w1 if w1.dtype == compute_dtype else w1.astype(compute_dtype)
    w2c = w2 if w2.dtype == compute_dtype else w2.astype(compute_dtype)
    b1_2d = b1.reshape(1, _H).astype(jnp.float32)
    b2_2d = b2.reshape(1, D).astype(jnp.float32)

    x_isize = jnp.dtype(x.dtype).itemsize
    c_isize = jnp.dtype(compute_dtype).itemsize
    o_isize = jnp.dtype(out_dtype).itemsize

    vmem_budget, n_cores = _tpu_budget_and_cores()
    if tile_b is None:
        tile_b = _choose_tile_b(B, D, x_isize, c_isize, o_isize,
                                vmem_budget, n_cores)
    tile_b = min(tile_b, B)
    num_steps = pl.cdiv(B, tile_b)
    grid = (num_steps,)

    in_specs = [
        _row_spec(tile_b, _IN, buffered=num_steps >= _X_BUFS),  # x (streamed)
        pl.BlockSpec((_IN, _H), lambda i: (0, 0)),   # w1 (VMEM-resident)
        pl.BlockSpec((1, _H), lambda i: (0, 0)),     # b1 (resident)
        pl.BlockSpec((_H, D), lambda i: (0, 0)),     # w2 (resident)
        pl.BlockSpec((1, D), lambda i: (0, 0)),      # b2 (resident)
    ]

    compiler_params = pltpu.CompilerParams(
        dimension_semantics=("parallel",),           # batch tiles independent
        vmem_limit_bytes=vmem_budget,
    )

    flops = 2 * B * _IN * _H + 2 * B * _H * D
    bytes_accessed = (B * _IN * x_isize
                      + _IN * _H * c_isize + _H * D * c_isize
                      + (_H + D) * 4
                      + B * D * o_isize)

    if return_intermediate:
        bytes_accessed += B * _H * o_isize
        out, inter = pl.pallas_call(
            _mlp_kernel_with_inter,
            out_shape=(
                jax.ShapeDtypeStruct((B, D), out_dtype),
                jax.ShapeDtypeStruct((B, _H), out_dtype),
            ),
            grid=grid,
            in_specs=in_specs,
            out_specs=(
                pl.BlockSpec((tile_b, D), lambda i: (i, 0)),
                pl.BlockSpec((tile_b, _H), lambda i: (i, 0)),
            ),
            compiler_params=compiler_params,
            cost_estimate=pl.CostEstimate(
                flops=flops, transcendentals=0, bytes_accessed=bytes_accessed),
        )(x, w1c, b1_2d, w2c, b2_2d)
        return out, inter

    out = pl.pallas_call(
        _mlp_kernel,
        out_shape=jax.ShapeDtypeStruct((B, D), out_dtype),
        grid=grid,
        in_specs=in_specs,
        out_specs=pl.BlockSpec((tile_b, D), lambda i: (i, 0)),
        compiler_params=compiler_params,
        cost_estimate=pl.CostEstimate(
            flops=flops, transcendentals=0, bytes_accessed=bytes_accessed),
    )(x, w1c, b1_2d, w2c, b2_2d)
    return out


def _reference(x, w1, b1, w2, b2):
    inter = jnp.maximum(x @ w1 + b1, 0.0)
    return inter @ w2 + b2, inter


if __name__ == "__main__":
    key = jax.random.PRNGKey(0)
    k_x, k_w1, k_b1, k_w2, k_b2, k_x2 = jax.random.split(key, 6)

    IN, H, OUT_DIM = 512, 128, 16

    # Deterministic parameter init (mimicking nn.Linear's uniform fan-in init).
    bound1 = 1.0 / jnp.sqrt(IN)
    w1 = jax.random.uniform(k_w1, (IN, H), minval=-bound1, maxval=bound1,
                            dtype=jnp.float32)
    b1 = jax.random.uniform(k_b1, (H,), minval=-bound1, maxval=bound1,
                            dtype=jnp.float32)
    bound2 = 1.0 / jnp.sqrt(H)
    w2 = jax.random.uniform(k_w2, (H, OUT_DIM), minval=-bound2, maxval=bound2,
                            dtype=jnp.float32)
    b2 = jax.random.uniform(k_b2, (OUT_DIM,), minval=-bound2, maxval=bound2,
                            dtype=jnp.float32)

    # --- 1) Small batch, exact f32 compute, with debug intermediate ---------
    B = 8
    x = jax.random.normal(k_x, (B, IN), dtype=jnp.float32)
    ref_out, ref_inter = _reference(x, w1, b1, w2, b2)

    out_f32, inter_f32 = cldnn_c_jan_forward(
        x, w1, b1, w2, b2, return_intermediate=True,
        compute_dtype=jnp.float32)
    out_f32, inter_f32 = jax.block_until_ready((out_f32, inter_f32))
    assert out_f32.shape == (B, OUT_DIM) and inter_f32.shape == (B, H)
    assert jnp.allclose(out_f32, ref_out, atol=1e-5, rtol=1e-5)
    assert jnp.allclose(inter_f32, ref_inter, atol=1e-5, rtol=1e-5)

    # --- 2) Small batch, default fast path (bf16 MXU feed, no intermediate) -
    out_bf16 = jax.block_until_ready(cldnn_c_jan_forward(x, w1, b1, w2, b2))
    assert out_bf16.shape == (B, OUT_DIM)
    assert jnp.allclose(out_bf16, ref_out, atol=5e-2, rtol=0.0)

    # --- 3) Multi-step grid (forced small tile): exercises streaming,
    #        3-deep x buffering, and a partial last batch tile ---------------
    B2 = 640
    x2 = jax.random.normal(k_x2, (B2, IN), dtype=jnp.float32)
    ref_out2, ref_inter2 = _reference(x2, w1, b1, w2, b2)

    out2, inter2 = cldnn_c_jan_forward(
        x2, w1, b1, w2, b2, return_intermediate=True,
        compute_dtype=jnp.float32, tile_b=256)
    out2, inter2 = jax.block_until_ready((out2, inter2))
    assert out2.shape == (B2, OUT_DIM) and inter2.shape == (B2, H)
    assert jnp.allclose(out2, ref_out2, atol=1e-4, rtol=1e-4)
    assert jnp.allclose(inter2, ref_inter2, atol=1e-4, rtol=1e-4)

    out2_bf16 = jax.block_until_ready(
        cldnn_c_jan_forward(x2, w1, b1, w2, b2, tile_b=256))
    assert out2_bf16.shape == (B2, OUT_DIM)
    assert jnp.allclose(out2_bf16, ref_out2, atol=1e-1, rtol=1e-2)

    print("KERNEL_OK")
</pallas_src>

<mosaic_0001>
module attributes {stable_mosaic.version = 11 : i64} {
  func.func @_mlp_kernel_with_inter(%arg0: i32, %arg1: memref<8x512xf32, #tpu.memory_space<vmem>>, %arg2: memref<512x128xf32, #tpu.memory_space<vmem>>, %arg3: memref<1x128xf32, #tpu.memory_space<vmem>>, %arg4: memref<128x16xf32, #tpu.memory_space<vmem>>, %arg5: memref<1x16xf32, #tpu.memory_space<vmem>>, %arg6: memref<8x16xf32, #tpu.memory_space<vmem>>, %arg7: memref<8x128xf32, #tpu.memory_space<vmem>>) attributes {dimension_semantics = [#tpu.dimension_semantics<parallel>], iteration_bounds = array<i64: 1>, scalar_prefetch = 0 : i64, scratch_operands = 0 : i64, tpu.core_type = #tpu.core_type<tc>, window_params = [{transform_indices = @transform_0, window_bounds = array<i64: 8, 512>}, {pipeline_mode = #tpu.pipeline_mode<synchronous>, transform_indices = @transform_1, window_bounds = array<i64: 512, 128>}, {pipeline_mode = #tpu.pipeline_mode<synchronous>, transform_indices = @transform_2, window_bounds = array<i64: 1, 128>}, {pipeline_mode = #tpu.pipeline_mode<synchronous>, transform_indices = @transform_3, window_bounds = array<i64: 128, 16>}, {pipeline_mode = #tpu.pipeline_mode<synchronous>, transform_indices = @transform_4, window_bounds = array<i64: 1, 16>}, {transform_indices = @transform_5, window_bounds = array<i64: 8, 16>}, {transform_indices = @transform_6, window_bounds = array<i64: 8, 128>}]} {
    %c0 = arith.constant 0 : index
    %c0_0 = arith.constant 0 : index
    %0 = vector.load %arg1[%c0, %c0_0] : memref<8x512xf32, #tpu.memory_space<vmem>>, vector<8x512xf32>
    %c0_1 = arith.constant 0 : index
    %c0_2 = arith.constant 0 : index
    %1 = vector.load %arg2[%c0_1, %c0_2] : memref<512x128xf32, #tpu.memory_space<vmem>>, vector<512x128xf32>
    %cst = arith.constant dense<0.000000e+00> : vector<8x128xf32>
    %2 = tpu.matmul %0, %1, %cst {dimension_numbers = #tpu.dot_dimension_numbers<[1], [0], [0], [1], [0, 0, 1, 1], [], []>} : vector<8x512xf32>, vector<512x128xf32>, vector<8x128xf32> -> vector<8x128xf32>
    %c0_3 = arith.constant 0 : index
    %c0_4 = arith.constant 0 : index
    %3 = vector.load %arg3[%c0_3, %c0_4] : memref<1x128xf32, #tpu.memory_space<vmem>>, vector<1x128xf32>
    %4 = vector.broadcast %3 : vector<1x128xf32> to vector<8x128xf32>
    %5 = arith.addf %2, %4 : vector<8x128xf32>
    %cst_5 = arith.constant 0.000000e+00 : f32
    %6 = vector.broadcast %cst_5 : f32 to vector<8x128xf32>
    %7 = arith.maximumf %5, %6 : vector<8x128xf32>
    %c0_6 = arith.constant 0 : index
    %c0_7 = arith.constant 0 : index
    %8 = vector.load %arg7[%c0_6, %c0_7] : memref<8x128xf32, #tpu.memory_space<vmem>>, vector<8x128xf32>
    tpu.vector_store %arg7[%c0_6, %c0_7], %7 {strides = array<i32>} : memref<8x128xf32, #tpu.memory_space<vmem>>, vector<8x128xf32>,
    %c0_8 = arith.constant 0 : index
    %c0_9 = arith.constant 0 : index
    %9 = vector.load %arg4[%c0_8, %c0_9] : memref<128x16xf32, #tpu.memory_space<vmem>>, vector<128x16xf32>
    %cst_10 = arith.constant dense<0.000000e+00> : vector<8x16xf32>
    %10 = tpu.matmul %7, %9, %cst_10 {dimension_numbers = #tpu.dot_dimension_numbers<[1], [0], [0], [1], [0, 0, 1, 1], [], []>} : vector<8x128xf32>, vector<128x16xf32>, vector<8x16xf32> -> vector<8x16xf32>
    %c0_11 = arith.constant 0 : index
    %c0_12 = arith.constant 0 : index
    %11 = vector.load %arg5[%c0_11, %c0_12] : memref<1x16xf32, #tpu.memory_space<vmem>>, vector<1x16xf32>
    %12 = vector.broadcast %11 : vector<1x16xf32> to vector<8x16xf32>
    %13 = arith.addf %10, %12 : vector<8x16xf32>
    %c0_13 = arith.constant 0 : index
    %c0_14 = arith.constant 0 : index
    %14 = vector.load %arg6[%c0_13, %c0_14] : memref<8x16xf32, #tpu.memory_space<vmem>>, vector<8x16xf32>
    tpu.vector_store %arg6[%c0_13, %c0_14], %13 {strides = array<i32>} : memref<8x16xf32, #tpu.memory_space<vmem>>, vector<8x16xf32>,
    return
  }
  func.func @transform_0(%arg0: i32) -> (i32, i32) {
    %c0_i32 = arith.constant 0 : i32
    %c0_i32_0 = arith.constant 0 : i32
    return %arg0, %c0_i32 : i32, i32
  }
  func.func @transform_1(%arg0: i32) -> (i32, i32) {
    %c0_i32 = arith.constant 0 : i32
    %c0_i32_0 = arith.constant 0 : i32
    %c0_i32_1 = arith.constant 0 : i32
    return %c0_i32, %c0_i32_0 : i32, i32
  }
  func.func @transform_2(%arg0: i32) -> (i32, i32) {
    %c0_i32 = arith.constant 0 : i32
    %c0_i32_0 = arith.constant 0 : i32
    %c0_i32_1 = arith.constant 0 : i32
    return %c0_i32, %c0_i32_0 : i32, i32
  }
  func.func @transform_3(%arg0: i32) -> (i32, i32) {
    %c0_i32 = arith.constant 0 : i32
    %c0_i32_0 = arith.constant 0 : i32
    %c0_i32_1 = arith.constant 0 : i32
    return %c0_i32, %c0_i32_0 : i32, i32
  }
  func.func @transform_4(%arg0: i32) -> (i32, i32) {
    %c0_i32 = arith.constant 0 : i32
    %c0_i32_0 = arith.constant 0 : i32
    %c0_i32_1 = arith.constant 0 : i32
    return %c0_i32, %c0_i32_0 : i32, i32
  }
  func.func @transform_5(%arg0: i32) -> (i32, i32) {
    %c0_i32 = arith.constant 0 : i32
    %c0_i32_0 = arith.constant 0 : i32
    return %arg0, %c0_i32 : i32, i32
  }
  func.func @transform_6(%arg0: i32) -> (i32, i32) {
    %c0_i32 = arith.constant 0 : i32
    %c0_i32_0 = arith.constant 0 : i32
    return %arg0, %c0_i32 : i32, i32
  }
}

</mosaic_0001>

<llo_original>
// kernel: tpu_custom_call.1
$region0: #{tpu_custom_call.1}
  #allocation0 [shape = 'u32[]', space=smem, size = 0x4, offset = 0x4, fixed_abs, tag = 'smem constant byte address 0x4 - core index']
  #allocation1 [shape = 'u32[144,128]{1,0:T(1,128)}', space=vmem, size = 0x12000, scoped, tag = 'internal scratch']
  %s0 = inlined_call_operand.vmem [shape: f32[8,512], index: 0, kind: input, shape index: {}]
  %s1 = inlined_call_operand.hbm [shape: f32[512,128], index: 1, kind: input, shape index: {}]
  %s2 = inlined_call_operand.vmem [shape: f32[1,128], index: 2, kind: input, shape index: {}]
  %s3 = inlined_call_operand.vmem [shape: f32[128,16], index: 3, kind: input, shape index: {}]
  %s4 = inlined_call_operand.vmem [shape: f32[1,16], index: 4, kind: input, shape index: {}]
  %s5 = inlined_call_operand.hbm [shape: f32[8,16], index: 5, kind: output, shape index: {0}]
  %s6 = inlined_call_operand.hbm [shape: f32[8,128], index: 6, kind: output, shape index: {1}]
  %7 = xla_tuple %s5, %s6
  %s8 = sld [smem:[#allocation0]]
  $region42: #{tpu_custom_call.1} parent=0
    _
  %s10 = ssub.s32 1, %s8
  %s11 = scalar_select 0, %s10, %s8
  $region1: #{tpu_custom_call.1} parent=0
    #allocation2 [shape = 'u8[262144]{0}', space=vmem, size = 0x40000, scoped, tag = 'input window, operand 1, single buffered']
    #allocation3 [shape = 's32[1]{0}', space=sflag, size = 0x4, scoped, tag = 'scoped memory for tpu_custom_call.1']
    #allocation4 [shape = 's32[1]{0}', space=sflag, size = 0x4, scoped, tag = 'scoped memory for tpu_custom_call.1']
    #allocation5 [shape = 'u8[4096]{0}', space=vmem, size = 0x1000, scoped, tag = 'output window, operand 0, single buffered']
    #allocation6 [shape = 'u8[4096]{0}', space=vmem, size = 0x1000, scoped, tag = 'output window, operand 1, single buffered']
    #allocation7 [shape = 's32[1]{0}', space=sflag, size = 0x4, scoped, tag = 'scoped memory for tpu_custom_call.1']
    %12 = vsyncpa [#allocation3], 0
    %13 = vsyncpa [#allocation4], 0
    %14 = vsyncpa [#allocation7], 0
    // Predicated region
    $region2: #{tpu_custom_call.1} parent=1 // pred_check
      _
    $region3: #{tpu_custom_call.1} parent=1 // pred_check_branch
      %16 = sbr.rel (0) target = $region5
    $region4: #{tpu_custom_call.1} parent=1 // pred_region
      _
    $region5: #{tpu_custom_call.1} parent=1 // pred_fallthru
      _
    // Predicated region
    $region6: #{tpu_custom_call.1} parent=1 // pred_check
      _
    $region7: #{tpu_custom_call.1} parent=1 // pred_check_branch
      %18 = sbr.rel (0) target = $region9
    $region8: #{tpu_custom_call.1} parent=1 // pred_region
      %s20 = ssub.s32 8192, 8192
      %21 = vsyncadd [#allocation3], %s20
      %s22 = sshll.u32 [#allocation2], 4
      %s23 = int_to_ptr.vmem [resolvable:$true] %s22
      %28 = dma.hbm_to_vmem [thread:$0]  %s1, 8192, %s23, [#allocation3], 128, 128, 8
    $region9: #{tpu_custom_call.1} parent=1 // pred_fallthru
      _
    // Predicated region
    $region10: #{tpu_custom_call.1} parent=1 // pred_check
      _
    $region11: #{tpu_custom_call.1} parent=1 // pred_check_branch
      %30 = sbr.rel (0) target = $region13
    $region12: #{tpu_custom_call.1} parent=1 // pred_region
      _
    $region13: #{tpu_custom_call.1} parent=1 // pred_fallthru
      _
    // Predicated region
    $region14: #{tpu_custom_call.1} parent=1 // pred_check
      _
    $region15: #{tpu_custom_call.1} parent=1 // pred_check_branch
      %32 = sbr.rel (0) target = $region17
    $region16: #{tpu_custom_call.1} parent=1 // pred_region
      _
    $region17: #{tpu_custom_call.1} parent=1 // pred_fallthru
      _
    // Predicated region
    $region18: #{tpu_custom_call.1} parent=1 // pred_check
      _
    $region19: #{tpu_custom_call.1} parent=1 // pred_check_branch
      %34 = sbr.rel (0) target = $region21
    $region20: #{tpu_custom_call.1} parent=1 // pred_region
      _
    $region21: #{tpu_custom_call.1} parent=1 // pred_fallthru
      _
    // Predicated region
    $region22: #{tpu_custom_call.1} parent=1 // pred_check
      _
    $region23: #{tpu_custom_call.1} parent=1 // pred_check_branch
      %36 = sbr.rel (0) target = $region25
    $region24: #{tpu_custom_call.1} parent=1 // pred_region
      %37 = dma.done [#allocation3], 8192
    $region25: #{tpu_custom_call.1} parent=1 // pred_fallthru
      _
    %v38 = vld [vmem:[%s0] sm:$0xff]
    %v39 = vld [vmem:[%s0 + $0x8] sm:$0xff]
    %v40 = vld [vmem:[%s0 + $0x10] sm:$0xff]
    %v41 = vld [vmem:[%s0 + $0x18] sm:$0xff]
    %v42 = vld [vmem:[#allocation2] sm:$0xff]
    %v43 = vld [vmem:[#allocation2 + $0x8] sm:$0xff]
    %v44 = vld [vmem:[#allocation2 + $0x10] sm:$0xff]
    %v45 = vld [vmem:[#allocation2 + $0x18] sm:$0xff]
    %v46 = vld [vmem:[#allocation2 + $0x20] sm:$0xff]
    %v47 = vld [vmem:[#allocation2 + $0x28] sm:$0xff]
    %v48 = vld [vmem:[#allocation2 + $0x30] sm:$0xff]
    %v49 = vld [vmem:[#allocation2 + $0x38] sm:$0xff]
    %v50 = vld [vmem:[#allocation2 + $0x40] sm:$0xff]
    %v51 = vld [vmem:[#allocation2 + $0x48] sm:$0xff]
    %v52 = vld [vmem:[#allocation2 + $0x50] sm:$0xff]
    %v53 = vld [vmem:[#allocation2 + $0x58] sm:$0xff]
    %v54 = vld [vmem:[#allocation2 + $0x60] sm:$0xff]
    %v55 = vld [vmem:[#allocation2 + $0x68] sm:$0xff]
    %v56 = vld [vmem:[#allocation2 + $0x70] sm:$0xff]
    %v57 = vld [vmem:[#allocation2 + $0x78] sm:$0xff]
    %v58 = vld [vmem:[#allocation2 + $0x80] sm:$0xff]
    %v59 = vld [vmem:[#allocation2 + $0x88] sm:$0xff]
    %v60 = vld [vmem:[#allocation2 + $0x90] sm:$0xff]
    %v61 = vld [vmem:[#allocation2 + $0x98] sm:$0xff]
    %v62 = vld [vmem:[#allocation2 + $0xa0] sm:$0xff]
    %v63 = vld [vmem:[#allocation2 + $0xa8] sm:$0xff]
    %v64 = vld [vmem:[#allocation2 + $0xb0] sm:$0xff]
    %v65 = vld [vmem:[#allocation2 + $0xb8] sm:$0xff]
    %v66 = vld [vmem:[#allocation2 + $0xc0] sm:$0xff]
    %v67 = vld [vmem:[#allocation2 + $0xc8] sm:$0xff]
    %v68 = vld [vmem:[#allocation2 + $0xd0] sm:$0xff]
    %v69 = vld [vmem:[#allocation2 + $0xd8] sm:$0xff]
    %v70 = vld [vmem:[#allocation2 + $0xe0] sm:$0xff]
    %v71 = vld [vmem:[#allocation2 + $0xe8] sm:$0xff]
    %v72 = vld [vmem:[#allocation2 + $0xf0] sm:$0xff]
    %v73 = vld [vmem:[#allocation2 + $0xf8] sm:$0xff]
    %v74 = vld [vmem:[#allocation2 + $0x100] sm:$0xff]
    %v75 = vld [vmem:[#allocation2 + $0x108] sm:$0xff]
    %v76 = vld [vmem:[#allocation2 + $0x110] sm:$0xff]
    %v77 = vld [vmem:[#allocation2 + $0x118] sm:$0xff]
    %v78 = vld [vmem:[#allocation2 + $0x120] sm:$0xff]
    %v79 = vld [vmem:[#allocation2 + $0x128] sm:$0xff]
    %v80 = vld [vmem:[#allocation2 + $0x130] sm:$0xff]
    %v81 = vld [vmem:[#allocation2 + $0x138] sm:$0xff]
    %v82 = vld [vmem:[#allocation2 + $0x140] sm:$0xff]
    %v83 = vld [vmem:[#allocation2 + $0x148] sm:$0xff]
    %v84 = vld [vmem:[#allocation2 + $0x150] sm:$0xff]
    %v85 = vld [vmem:[#allocation2 + $0x158] sm:$0xff]
    %v86 = vld [vmem:[#allocation2 + $0x160] sm:$0xff]
    %v87 = vld [vmem:[#allocation2 + $0x168] sm:$0xff]
    %v88 = vld [vmem:[#allocation2 + $0x170] sm:$0xff]
    %v89 = vld [vmem:[#allocation2 + $0x178] sm:$0xff]
    %v90 = vld [vmem:[#allocation2 + $0x180] sm:$0xff]
    %v91 = vld [vmem:[#allocation2 + $0x188] sm:$0xff]
    %v92 = vld [vmem:[#allocation2 + $0x190] sm:$0xff]
    %v93 = vld [vmem:[#allocation2 + $0x198] sm:$0xff]
    %v94 = vld [vmem:[#allocation2 + $0x1a0] sm:$0xff]
    %v95 = vld [vmem:[#allocation2 + $0x1a8] sm:$0xff]
    %v96 = vld [vmem:[#allocation2 + $0x1b0] sm:$0xff]
    %v97 = vld [vmem:[#allocation2 + $0x1b8] sm:$0xff]
    %v98 = vld [vmem:[#allocation2 + $0x1c0] sm:$0xff]
    %v99 = vld [vmem:[#allocation2 + $0x1c8] sm:$0xff]
    %v100 = vld [vmem:[#allocation2 + $0x1d0] sm:$0xff]
    %v101 = vld [vmem:[#allocation2 + $0x1d8] sm:$0xff]
    %v102 = vld [vmem:[#allocation2 + $0x1e0] sm:$0xff]
    %v103 = vld [vmem:[#allocation2 + $0x1e8] sm:$0xff]
    %v104 = vld [vmem:[#allocation2 + $0x1f0] sm:$0xff]
    %v105 = vld [vmem:[#allocation2 + $0x1f8] sm:$0xff]
    %v106 = vld [vmem:[%s2] sm:$0x1]
    %v108 = vlaneseq
    %v109 = vshrl.u32 %v108, 7
    %v110 = vsub.s32 0, %v109
    %v111 = vrot.slane %v106, %v110
    %113 = vmatprep.subr.mxu0 0.0
    %114 = vmatpush1.msra.mxu0 %v57
    %115 = vmatprep.subr.mxu0 0.0
    %116 = vmatpush1.msra.mxu0 %v56
    %117 = vmatprep.subr.mxu0 0.0
    %118 = vmatpush1.msra.mxu0 %v55
    %119 = vmatprep.subr.mxu0 0.0
    %120 = vmatpush1.msra.mxu0 %v54
    %121 = vmatprep.subr.mxu0 0.0
    %122 = vmatpush1.msra.mxu0 %v53
    %123 = vmatprep.subr.mxu0 0.0
    %124 = vmatpush1.msra.mxu0 %v52
    %125 = vmatprep.subr.mxu0 0.0
    %126 = vmatpush1.msra.mxu0 %v51
    %127 = vmatprep.subr.mxu0 0.0
    %128 = vmatpush1.msra.mxu0 %v50
    %129 = vmatprep.subr.mxu0 0.0
    %130 = vmatpush1.msra.mxu0 %v49
    %131 = vmatprep.subr.mxu0 0.0
    %132 = vmatpush1.msra.mxu0 %v48
    %133 = vmatprep.subr.mxu0 0.0
    %134 = vmatpush1.msra.mxu0 %v47
    %135 = vmatprep.subr.mxu0 0.0
    %136 = vmatpush1.msra.mxu0 %v46
    %137 = vmatprep.subr.mxu0 0.0
    %138 = vmatpush1.msra.mxu0 %v45
    %139 = vmatprep.subr.mxu0 0.0
    %140 = vmatpush1.msra.mxu0 %v44
    %141 = vmatprep.subr.mxu0 0.0
    %142 = vmatpush1.msra.mxu0 %v43
    %143 = vmatprep.subr.mxu0 0.0
    %144 = vmatpush1.msra.mxu0 %v42
    %145 = vmatprep.subr.mxu0 0.0
    %146 = vmatpush2.msra.mxu0 %v73
    %147 = vmatprep.subr.mxu0 0.0
    %148 = vmatpush2.msra.mxu0 %v72
    %149 = vmatprep.subr.mxu0 0.0
    %150 = vmatpush2.msra.mxu0 %v71
    %151 = vmatprep.subr.mxu0 0.0
    %152 = vmatpush2.msra.mxu0 %v70
    %153 = vmatprep.subr.mxu0 0.0
    %154 = vmatpush2.msra.mxu0 %v69
    %155 = vmatprep.subr.mxu0 0.0
    %156 = vmatpush2.msra.mxu0 %v68
    %157 = vmatprep.subr.mxu0 0.0
    %158 = vmatpush2.msra.mxu0 %v67
    %159 = vmatprep.subr.mxu0 0.0
    %160 = vmatpush2.msra.mxu0 %v66
    %161 = vmatprep.subr.mxu0 0.0
    %162 = vmatpush2.msra.mxu0 %v65
    %163 = vmatprep.subr.mxu0 0.0
    %164 = vmatpush2.msra.mxu0 %v64
    %165 = vmatprep.subr.mxu0 0.0
    %166 = vmatpush2.msra.mxu0 %v63
    %167 = vmatprep.subr.mxu0 0.0
    %168 = vmatpush2.msra.mxu0 %v62
    %169 = vmatprep.subr.mxu0 0.0
    %170 = vmatpush2.msra.mxu0 %v61
    %171 = vmatprep.subr.mxu0 0.0
    %172 = vmatpush2.msra.mxu0 %v60
    %173 = vmatprep.subr.mxu0 0.0
    %174 = vmatpush2.msra.mxu0 %v59
    %175 = vmatprep.subr.mxu0 0.0
    %176 = vmatpush2.msra.mxu0 %v58
    %177 = vmatprep.mubr.f32.mxu0 %v39
    %178 = vmatmul.mubr.f32.gmra.mxu0 %v38
    %v179 = vpop.f32.mrf.mxu0
    %v180 = vadd.f32 %v111, %v179
    %v181 = vpop.f32.mrf.mxu0
    %182 = vdwg.mxu0
    %183 = vmatprep.subr.mxu0 0.0
    %184 = vmatpush1.msra.mxu0 %v89
    %185 = vmatprep.subr.mxu0 0.0
    %186 = vmatpush1.msra.mxu0 %v88
    %187 = vmatprep.subr.mxu0 0.0
    %188 = vmatpush1.msra.mxu0 %v87
    %189 = vmatprep.subr.mxu0 0.0
    %190 = vmatpush1.msra.mxu0 %v86
    %191 = vmatprep.subr.mxu0 0.0
    %192 = vmatpush1.msra.mxu0 %v85
    %193 = vmatprep.subr.mxu0 0.0
    %194 = vmatpush1.msra.mxu0 %v84
    %195 = vmatprep.subr.mxu0 0.0
    %196 = vmatpush1.msra.mxu0 %v83
    %197 = vmatprep.subr.mxu0 0.0
    %198 = vmatpush1.msra.mxu0 %v82
    %199 = vmatprep.subr.mxu0 0.0
    %200 = vmatpush1.msra.mxu0 %v81
    %201 = vmatprep.subr.mxu0 0.0
    %202 = vmatpush1.msra.mxu0 %v80
    %203 = vmatprep.subr.mxu0 0.0
    %204 = vmatpush1.msra.mxu0 %v79
    %205 = vmatprep.subr.mxu0 0.0
    %206 = vmatpush1.msra.mxu0 %v78
    %207 = vmatprep.subr.mxu0 0.0
    %208 = vmatpush1.msra.mxu0 %v77
    %209 = vmatprep.subr.mxu0 0.0
    %210 = vmatpush1.msra.mxu0 %v76
    %211 = vmatprep.subr.mxu0 0.0
    %212 = vmatpush1.msra.mxu0 %v75
    %213 = vmatprep.subr.mxu0 0.0
    %214 = vmatpush1.msra.mxu0 %v74
    %215 = vmatprep.subr.mxu0 0.0
    %216 = vmatpush2.msra.mxu0 %v105
    %217 = vmatprep.subr.mxu0 0.0
    %218 = vmatpush2.msra.mxu0 %v104
    %219 = vmatprep.subr.mxu0 0.0
    %220 = vmatpush2.msra.mxu0 %v103
    %221 = vmatprep.subr.mxu0 0.0
    %222 = vmatpush2.msra.mxu0 %v102
    %223 = vmatprep.subr.mxu0 0.0
    %224 = vmatpush2.msra.mxu0 %v101
    %225 = vmatprep.subr.mxu0 0.0
    %226 = vmatpush2.msra.mxu0 %v100
    %227 = vmatprep.subr.mxu0 0.0
    %228 = vmatpush2.msra.mxu0 %v99
    %229 = vmatprep.subr.mxu0 0.0
    %230 = vmatpush2.msra.mxu0 %v98
    %231 = vmatprep.subr.mxu0 0.0
    %232 = vmatpush2.msra.mxu0 %v97
    %233 = vmatprep.subr.mxu0 0.0
    %234 = vmatpush2.msra.mxu0 %v96
    %235 = vmatprep.subr.mxu0 0.0
    %236 = vmatpush2.msra.mxu0 %v95
    %237 = vmatprep.subr.mxu0 0.0
    %238 = vmatpush2.msra.mxu0 %v94
    %239 = vmatprep.subr.mxu0 0.0
    %240 = vmatpush2.msra.mxu0 %v93
    %241 = vmatprep.subr.mxu0 0.0
    %242 = vmatpush2.msra.mxu0 %v92
    %243 = vmatprep.subr.mxu0 0.0
    %244 = vmatpush2.msra.mxu0 %v91
    %245 = vmatprep.subr.mxu0 0.0
    %246 = vmatpush2.msra.mxu0 %v90
    %247 = vmatprep.mubr.f32.mxu0 %v41
    %248 = vmatmul.mubr.f32.gmra.mxu0 %v40
    %v249 = vpop.f32.mrf.mxu0
    %v250 = vadd.f32 %v180, %v249
    %v251 = vpop.f32.mrf.mxu0
    %252 = vdwg.mxu0
    %v253 = vmax.f32 %v250, 0.0
    %254 = vst [vmem:[#allocation6] sm:$0xff] %v253
    %v255 = vld [vmem:[%s3] sm:$0xff]
    %v256 = vld [vmem:[%s3 + $0x8] sm:$0xff]
    %v257 = vld [vmem:[%s3 + $0x10] sm:$0xff]
    %v258 = vld [vmem:[%s3 + $0x18] sm:$0xff]
    %v259 = vld [vmem:[%s3 + $0x20] sm:$0xff]
    %v260 = vld [vmem:[%s3 + $0x28] sm:$0xff]
    %v261 = vld [vmem:[%s3 + $0x30] sm:$0xff]
    %v262 = vld [vmem:[%s3 + $0x38] sm:$0xff]
    %v263 = vld [vmem:[%s3 + $0x40] sm:$0xff]
    %v264 = vld [vmem:[%s3 + $0x48] sm:$0xff]
    %v265 = vld [vmem:[%s3 + $0x50] sm:$0xff]
    %v266 = vld [vmem:[%s3 + $0x58] sm:$0xff]
    %v267 = vld [vmem:[%s3 + $0x60] sm:$0xff]
    %v268 = vld [vmem:[%s3 + $0x68] sm:$0xff]
    %v269 = vld [vmem:[%s3 + $0x70] sm:$0xff]
    %v270 = vld [vmem:[%s3 + $0x78] sm:$0xff]
    %v271 = vld [vmem:[%s4] sm:$0x1]
    %v273 = vlaneseq
    %v274 = vshrl.u32 %v273, 7
    %v275 = vsub.s32 0, %v274
    %v276 = vrot.slane %v271, %v275
    %278 = vmatprep.subr.mxu0 0.0
    %279 = vmatpush1.msra.mxu0 %v270
    %280 = vmatprep.subr.mxu0 0.0
    %281 = vmatpush1.msra.mxu0 %v269
    %282 = vmatprep.subr.mxu0 0.0
    %283 = vmatpush1.msra.mxu0 %v268
    %284 = vmatprep.subr.mxu0 0.0
    %285 = vmatpush1.msra.mxu0 %v267
    %286 = vmatprep.subr.mxu0 0.0
    %287 = vmatpush1.msra.mxu0 %v266
    %288 = vmatprep.subr.mxu0 0.0
    %289 = vmatpush1.msra.mxu0 %v265
    %290 = vmatprep.subr.mxu0 0.0
    %291 = vmatpush1.msra.mxu0 %v264
    %292 = vmatprep.subr.mxu0 0.0
    %293 = vmatpush1.msra.mxu0 %v263
    %294 = vmatprep.subr.mxu0 0.0
    %295 = vmatpush1.msra.mxu0 %v262
    %296 = vmatprep.subr.mxu0 0.0
    %297 = vmatpush1.msra.mxu0 %v261
    %298 = vmatprep.subr.mxu0 0.0
    %299 = vmatpush1.msra.mxu0 %v260
    %300 = vmatprep.subr.mxu0 0.0
    %301 = vmatpush1.msra.mxu0 %v259
    %302 = vmatprep.subr.mxu0 0.0
    %303 = vmatpush1.msra.mxu0 %v258
    %304 = vmatprep.subr.mxu0 0.0
    %305 = vmatpush1.msra.mxu0 %v257
    %306 = vmatprep.subr.mxu0 0.0
    %307 = vmatpush1.msra.mxu0 %v256
    %308 = vmatprep.subr.mxu0 0.0
    %309 = vmatpush1.msra.mxu0 %v255
    %310 = vmatprep.subr.mxu0 0.0
    %311 = vmatpush2.msra.mxu0 0.0
    %312 = vmatprep.subr.mxu0 0.0
    %313 = vmatpush2.msra.mxu0 0.0
    %314 = vmatprep.subr.mxu0 0.0
    %315 = vmatpush2.msra.mxu0 0.0
    %316 = vmatprep.subr.mxu0 0.0
    %317 = vmatpush2.msra.mxu0 0.0
    %318 = vmatprep.subr.mxu0 0.0
    %319 = vmatpush2.msra.mxu0 0.0
    %320 = vmatprep.subr.mxu0 0.0
    %321 = vmatpush2.msra.mxu0 0.0
    %322 = vmatprep.subr.mxu0 0.0
    %323 = vmatpush2.msra.mxu0 0.0
    %324 = vmatprep.subr.mxu0 0.0
    %325 = vmatpush2.msra.mxu0 0.0
    %326 = vmatprep.subr.mxu0 0.0
    %327 = vmatpush2.msra.mxu0 0.0
    %328 = vmatprep.subr.mxu0 0.0
    %329 = vmatpush2.msra.mxu0 0.0
    %330 = vmatprep.subr.mxu0 0.0
    %331 = vmatpush2.msra.mxu0 0.0
    %332 = vmatprep.subr.mxu0 0.0
    %333 = vmatpush2.msra.mxu0 0.0
    %334 = vmatprep.subr.mxu0 0.0
    %335 = vmatpush2.msra.mxu0 0.0
    %336 = vmatprep.subr.mxu0 0.0
    %337 = vmatpush2.msra.mxu0 0.0
    %338 = vmatprep.subr.mxu0 0.0
    %339 = vmatpush2.msra.mxu0 0.0
    %340 = vmatprep.subr.mxu0 0.0
    %341 = vmatpush2.msra.mxu0 0.0
    %342 = vmatprep.mubr.f32.mxu0 0.0
    %343 = vmatmul.mubr.f32.gmra.mxu0 %v253
    %v344 = vpop.f32.mrf.mxu0
    %v345 = vadd.f32 %v276, %v344
    %v346 = vpop.f32.mrf.mxu0
    %347 = vdwg.mxu0
    %vm348 = vcmask 130048
    %349 = vst.msk [vmem:[#allocation5] sm:$0xff] %vm348, %v345
    // Predicated region
    $region26: #{tpu_custom_call.1} parent=1 // pred_check
      _
    $region27: #{tpu_custom_call.1} parent=1 // pred_check_branch
      %351 = sbr.rel (0) target = $region29
    $region28: #{tpu_custom_call.1} parent=1 // pred_region
      %s353 = ssub.s32 128, 128
      %354 = vsyncadd [#allocation4], %s353
      %s356 = sshll.u32 [#allocation5], 4
      %s357 = int_to_ptr.vmem [resolvable:$true] %s356
      %359 = dma.vmem_to_hbm [thread:$0]  %s357, 128, %s5, [#allocation4]
    $region29: #{tpu_custom_call.1} parent=1 // pred_fallthru
      _
    // Predicated region
    $region30: #{tpu_custom_call.1} parent=1 // pred_check
      _
    $region31: #{tpu_custom_call.1} parent=1 // pred_check_branch
      %361 = sbr.rel (0) target = $region33
    $region32: #{tpu_custom_call.1} parent=1 // pred_region
      %s363 = ssub.s32 128, 128
      %364 = vsyncadd [#allocation7], %s363
      %s366 = sshll.u32 [#allocation6], 4
      %s367 = int_to_ptr.vmem [resolvable:$true] %s366
      %369 = dma.vmem_to_hbm [thread:$0]  %s367, 128, %s6, [#allocation7]
    $region33: #{tpu_custom_call.1} parent=1 // pred_fallthru
      _
    // Predicated region
    $region34: #{tpu_custom_call.1} parent=1 // pred_check
      _
    $region35: #{tpu_custom_call.1} parent=1 // pred_check_branch
      %371 = sbr.rel (0) target = $region37
    $region36: #{tpu_custom_call.1} parent=1 // pred_region
      %372 = dma.done [#allocation4], 128
    $region37: #{tpu_custom_call.1} parent=1 // pred_fallthru
      _
    // Predicated region
    $region38: #{tpu_custom_call.1} parent=1 // pred_check
      _
    $region39: #{tpu_custom_call.1} parent=1 // pred_check_branch
      %374 = sbr.rel (0) target = $region41
    $region40: #{tpu_custom_call.1} parent=1 // pred_region
      %375 = dma.done [#allocation7], 128
    $region41: #{tpu_custom_call.1} parent=1 // pred_fallthru
      _
    %376 = vsyncpa [#allocation3], 1
    %377 = vsyncpa [#allocation4], 1
    %378 = vsyncpa [#allocation7], 1

</llo_original>
